<compile_context>
chip_gen: v7x
topology: tpu7x:2x2x1
jax: 0.10.0
libtpu: 0.0.40
codegen_flags: <defaults>
</compile_context>

<pallas_src>
import functools
import math

import jax
import jax.numpy as jnp
from jax import lax
from jax.experimental import pallas as pl
from jax.experimental.pallas import tpu as pltpu

BW = 8
QMAX = float(2 ** BW - 1)          # asymmetric code range [0, 255]
EPS = 1e-12                        # guards scale==0 for constant tensors


def _cdiv(a, b):
    return -(-a // b)


def _round_up(a, b):
    return _cdiv(a, b) * b


def _pick_tile(dim, granule, cap):
    """Largest legal tile for one dim: a multiple of `granule` <= cap, or the
    full (small) dim itself."""
    if dim <= granule:
        return dim
    cap = max(granule, (cap // granule) * granule)
    return min(cap, (dim // granule) * granule)


def _vmem_limit_bytes():
    """Generation-aware scoped-VMEM limit (v5e/v6e: 128 MiB phys, v7x: 64 MiB)."""
    cap = None
    try:
        cap = getattr(pltpu.get_tpu_info(), "vmem_capacity_bytes", None)
    except Exception:
        cap = None
    if not cap:
        cap = 64 * 1024 * 1024       # conservative fallback (v7x per-core VMEM)
    return int(min(cap * 3 // 4, 96 * 1024 * 1024))


# --------------------- global min/max (quantizer calibration) ----------------

def _minmax_kernel(x_ref, mn_ref, mx_ref, *, rows, tr):
    x = x_ref[...].astype(jnp.float32)
    if rows % tr != 0:   # trace-time: mask only exists when there is a remainder
        r = lax.broadcasted_iota(jnp.int32, x.shape, 0) + pl.program_id(0) * tr
        valid = r < rows
        mn = jnp.min(jnp.where(valid, x, jnp.inf))
        mx = jnp.max(jnp.where(valid, x, -jnp.inf))
    else:
        mn = jnp.min(x)
        mx = jnp.max(x)
    mn_ref[...] = jnp.broadcast_to(mn, mn_ref.shape)
    mx_ref[...] = jnp.broadcast_to(mx, mx_ref.shape)


def pallas_global_minmax(x2d, *, block_budget, vmem_limit):
    """Global min / max of a 2-D array via a byte-capped row-tiled reduction."""
    R, C = x2d.shape
    row_bytes = 2 * C * x2d.dtype.itemsize           # double-buffered input
    cap = max(8, (block_budget // max(row_bytes, 1)) // 8 * 8)
    tr = _pick_tile(R, 8, min(512, cap))
    g = _cdiv(R, tr)
    mins, maxs = pl.pallas_call(
        functools.partial(_minmax_kernel, rows=R, tr=tr),
        out_shape=(jax.ShapeDtypeStruct((g * 8, 128), jnp.float32),
                   jax.ShapeDtypeStruct((g * 8, 128), jnp.float32)),
        grid=(g,),
        in_specs=[pl.BlockSpec((tr, C), lambda i: (i, 0))],
        out_specs=(pl.BlockSpec((8, 128), lambda i: (i, 0)),
                   pl.BlockSpec((8, 128), lambda i: (i, 0))),
        compiler_params=pltpu.CompilerParams(
            dimension_semantics=("parallel",),
            vmem_limit_bytes=vmem_limit),
    )(x2d)
    return jnp.min(mins), jnp.max(maxs)


# ---------------------------- weight -> int8 codes ---------------------------

def _weight_codes_kernel(scale_ref, offset_ref, w_ref, c_ref):
    inv = 1.0 / scale_ref[0, 0]
    off = offset_ref[0, 0]
    q = jnp.clip(jnp.round(w_ref[...].astype(jnp.float32) * inv) + off, 0.0, QMAX)
    # codes stored shifted by -128 so they fit int8; the matmul adds it back.
    c_ref[...] = (q - 128.0).astype(jnp.int32).astype(jnp.int8)


def pallas_weight_codes(weight, scale, offset, *, block_budget, vmem_limit):
    O, K = weight.shape
    row_bytes = 2 * K * (weight.dtype.itemsize + 1)   # f32 in + int8 out, x2 buf
    cap = max(8, (block_budget // max(row_bytes, 1)) // 8 * 8)
    to = _pick_tile(O, 8, min(512, cap))
    g = _cdiv(O, to)
    return pl.pallas_call(
        _weight_codes_kernel,
        out_shape=jax.ShapeDtypeStruct((O, K), jnp.int8),
        grid=(g,),
        in_specs=[pl.BlockSpec(memory_space=pltpu.MemorySpace.SMEM),
                  pl.BlockSpec(memory_space=pltpu.MemorySpace.SMEM),
                  pl.BlockSpec((to, K), lambda i: (i, 0))],
        out_specs=pl.BlockSpec((to, K), lambda i: (i, 0)),
        compiler_params=pltpu.CompilerParams(
            dimension_semantics=("parallel",),
            vmem_limit_bytes=vmem_limit),
    )(jnp.reshape(scale, (1, 1)).astype(jnp.float32),
      jnp.reshape(offset, (1, 1)).astype(jnp.float32),
      weight)


# -------- fused linear: in-kernel weight dequant + bias + act calibration ----

def _make_linear_kernel(*, m_axis, o_axis, quantized, calibrate, gk,
                        tm, tn, m_total, o_total):
    mask_rows = (m_total % tm) != 0    # trace-time flags: masks only when needed
    mask_cols = (o_total % tn) != 0

    def kernel(*refs):
        idx = 0
        if quantized:
            w_scale_ref, w_off_ref = refs[0], refs[1]
            idx = 2
        x_ref, w_ref, b_ref = refs[idx], refs[idx + 1], refs[idx + 2]
        idx += 3
        o_ref = refs[idx]
        idx += 1
        if calibrate:
            mn_ref, mx_ref = refs[idx], refs[idx + 1]
            idx += 2
        acc_ref = refs[idx] if gk > 1 else None

        if quantized:
            # in-register dequant of int8 codes (VPU work, hides under the MXU)
            w = ((w_ref[...].astype(jnp.float32) - w_off_ref[0, 0])
                 * w_scale_ref[0, 0]).astype(jnp.bfloat16)
            xv = x_ref[...].astype(jnp.bfloat16)
        else:
            w = w_ref[...]
            xv = x_ref[...]
        part = lax.dot_general(xv, w, (((1,), (1,)), ((), ())),
                               preferred_element_type=jnp.float32)

        def _epilogue(acc):
            out = acc + b_ref[...].astype(jnp.float32)
            o_ref[...] = out.astype(o_ref.dtype)
            if calibrate:
                valid = None
                if mask_rows:
                    row = (lax.broadcasted_iota(jnp.int32, out.shape, 0)
                           + pl.program_id(m_axis) * tm)
                    valid = row < m_total
                if mask_cols:
                    col = (lax.broadcasted_iota(jnp.int32, out.shape, 1)
                           + pl.program_id(o_axis) * tn)
                    cvalid = col < o_total
                    valid = cvalid if valid is None else jnp.logical_and(valid, cvalid)
                vmin = out if valid is None else jnp.where(valid, out, jnp.inf)
                vmax = out if valid is None else jnp.where(valid, out, -jnp.inf)
                mn_ref[...] = jnp.broadcast_to(jnp.min(vmin), mn_ref.shape)
                mx_ref[...] = jnp.broadcast_to(jnp.max(vmax), mx_ref.shape)

        if gk == 1:
            _epilogue(part)
        else:
            @pl.when(pl.program_id(2) == 0)
            def _():
                acc_ref[...] = jnp.zeros_like(acc_ref)
            acc_ref[...] += part

            @pl.when(pl.program_id(2) == gk - 1)
            def _():
                _epilogue(acc_ref[...])

    return kernel


def _choose_matmul_tiles(M, O, K, x_bytes, w_bytes, budget):
    tm = _pick_tile(M, 8, 512)
    tn = _pick_tile(O, 128, 512)

    def need(tm_, tn_, tk_):
        return (2 * tm_ * tk_ * x_bytes        # x block, double-buffered
                + 2 * tn_ * tk_ * w_bytes      # weight block, double-buffered
                + 3 * tm_ * tn_ * 4            # out block x2 + f32 accumulator
                + 2 * tn_ * 4                  # bias block
                + 4 * 8 * 128 * 4)             # min/max side blocks

    tk = K
    if need(tm, tn, tk) > budget:
        # chunk the contraction so blocks stay 2-deep pipelined under the budget
        for cand in (2048, 1024, 512, 256):
            if cand < K and K % cand == 0:
                tk = cand
                if need(tm, tn, tk) <= budget:
                    break
    while need(tm, tn, tk) > budget and tm > 8:
        tm = max(8, _round_up(tm // 2, 8))
    while need(tm, tn, tk) > budget and tn > 128:
        tn = max(128, (tn // 2) // 128 * 128)
    # TODO(synk): if K is huge and not divisible by any chunk candidate we fall
    # back to full-K blocks (may exceed the budget); pad K in that case.
    return tm, tn, tk


def pallas_linear(x2d, w_mat, bias_row, *, quantized, calibrate,
                  w_scale=None, w_offset=None, block_budget=None,
                  vmem_limit=None):
    M, K = x2d.shape
    O = w_mat.shape[0]
    x_bytes = x2d.dtype.itemsize
    w_bytes = w_mat.dtype.itemsize
    tm, tn, tk = _choose_matmul_tiles(M, O, K, x_bytes, w_bytes, block_budget)
    gm, gn = _cdiv(M, tm), _cdiv(O, tn)
    gk = K // tk if (tk < K and K % tk == 0) else 1
    if gk == 1:
        tk = K

    # Grid order: make the operand with the larger total HBM traffic resident
    # (its block index depends only on the outer grid axis).
    stream_a = M * K * x_bytes + gm * O * K * w_bytes   # x resident, w streamed
    stream_b = O * K * w_bytes + gn * M * K * x_bytes   # w resident, x streamed
    weight_resident = stream_b < stream_a
    if weight_resident:
        grid = (gn, gm, gk)
        m_axis, o_axis = 1, 0
        x_map = lambda j, i, k: (i, k)
        w_map = lambda j, i, k: (j, k)
        b_map = lambda j, i, k: (0, j)
        o_map = lambda j, i, k: (i, j)
    else:
        grid = (gm, gn, gk)
        m_axis, o_axis = 0, 1
        x_map = lambda i, j, k: (i, k)
        w_map = lambda i, j, k: (j, k)
        b_map = lambda i, j, k: (0, j)
        o_map = lambda i, j, k: (i, j)

    kernel = _make_linear_kernel(m_axis=m_axis, o_axis=o_axis,
                                 quantized=quantized, calibrate=calibrate,
                                 gk=gk, tm=tm, tn=tn, m_total=M, o_total=O)

    in_specs, args = [], []
    if quantized:
        in_specs += [pl.BlockSpec(memory_space=pltpu.MemorySpace.SMEM)] * 2
        args += [jnp.reshape(w_scale, (1, 1)).astype(jnp.float32),
                 jnp.reshape(w_offset, (1, 1)).astype(jnp.float32)]
    in_specs += [pl.BlockSpec((tm, tk), x_map),
                 pl.BlockSpec((tn, tk), w_map),
                 pl.BlockSpec((1, tn), b_map)]
    args += [x2d, w_mat, bias_row]

    if calibrate:
        out_shape = (jax.ShapeDtypeStruct((M, O), jnp.float32),
                     jax.ShapeDtypeStruct((gm * 8, gn * 128), jnp.float32),
                     jax.ShapeDtypeStruct((gm * 8, gn * 128), jnp.float32))
        out_specs = (pl.BlockSpec((tm, tn), o_map),
                     pl.BlockSpec((8, 128), o_map),
                     pl.BlockSpec((8, 128), o_map))
    else:
        out_shape = jax.ShapeDtypeStruct((M, O), jnp.float32)
        out_specs = pl.BlockSpec((tm, tn), o_map)

    scratch = [pltpu.VMEM((tm, tn), jnp.float32)] if gk > 1 else []

    return pl.pallas_call(
        kernel,
        out_shape=out_shape,
        grid=grid,
        in_specs=in_specs,
        out_specs=out_specs,
        scratch_shapes=scratch,
        compiler_params=pltpu.CompilerParams(
            dimension_semantics=("parallel", "parallel", "arbitrary"),
            vmem_limit_bytes=vmem_limit),
    )(*args)


# --------------------------- activation quant-dequant ------------------------

def _qdq_kernel(scale_ref, offset_ref, x_ref, o_ref):
    scale = scale_ref[0, 0]
    off = offset_ref[0, 0]
    inv = 1.0 / scale
    q = jnp.clip(jnp.round(x_ref[...].astype(jnp.float32) * inv) + off, 0.0, QMAX)
    o_ref[...] = ((q - off) * scale).astype(o_ref.dtype)


def pallas_qdq(x2d, scale, offset, *, block_budget, vmem_limit):
    R, C = x2d.shape
    tc = _pick_tile(C, 128, 2048)
    row_bytes = 4 * tc * 4                      # f32 in + out, double-buffered
    cap = max(8, (block_budget // max(row_bytes, 1)) // 8 * 8)
    tr = _pick_tile(R, 8, min(512, cap))
    gr, gc = _cdiv(R, tr), _cdiv(C, tc)
    return pl.pallas_call(
        _qdq_kernel,
        out_shape=jax.ShapeDtypeStruct((R, C), x2d.dtype),
        grid=(gr, gc),
        in_specs=[pl.BlockSpec(memory_space=pltpu.MemorySpace.SMEM),
                  pl.BlockSpec(memory_space=pltpu.MemorySpace.SMEM),
                  pl.BlockSpec((tr, tc), lambda i, j: (i, j))],
        out_specs=pl.BlockSpec((tr, tc), lambda i, j: (i, j)),
        input_output_aliases={2: 0},            # in-place: no second M*O buffer
        compiler_params=pltpu.CompilerParams(
            dimension_semantics=("parallel", "parallel"),
            vmem_limit_bytes=vmem_limit),
    )(jnp.reshape(scale, (1, 1)).astype(jnp.float32),
      jnp.reshape(offset, (1, 1)).astype(jnp.float32),
      x2d)


# ------------------------------- forward -------------------------------------

def quant_linear_forward(x, weight, bias=None, quantize=True):
    """QuantLinear.forward. x: (..., K); weight: (O, K); bias: (O,) or None."""
    O, K = weight.shape
    batch_shape = x.shape[:-1]
    M = int(math.prod(batch_shape)) if batch_shape else 1
    x2d = x.reshape(M, K)

    b = jnp.zeros((O,), jnp.float32) if bias is None else bias
    bias_row = b.astype(jnp.float32).reshape(1, O)

    vmem_limit = _vmem_limit_bytes()
    ew_budget = min(16 * 1024 * 1024, vmem_limit // 3)
    mm_budget = (vmem_limit * 11) // 20          # ~55% of the scoped limit

    if not quantize:
        out = pallas_linear(x2d, weight, bias_row, quantized=False,
                            calibrate=False, block_budget=mm_budget,
                            vmem_limit=vmem_limit)
        return out.reshape(batch_shape + (O,))

    # 1) weight quantizer (minmax, asymmetric, bw=8)
    w_min, w_max = pallas_global_minmax(weight, block_budget=ew_budget,
                                        vmem_limit=vmem_limit)
    s_w = jnp.maximum((w_max - w_min) / QMAX, EPS)
    off_w = jnp.round(-w_min / s_w)
    w_codes = pallas_weight_codes(weight, s_w, off_w, block_budget=ew_budget,
                                  vmem_limit=vmem_limit)

    # 2) linear (bf16 MXU, f32 acc) with in-kernel int8 dequant;
    #    bias add + activation min/max calibration fused into the epilogue.
    out, mins, maxs = pallas_linear(
        x2d, w_codes, bias_row, quantized=True, calibrate=True,
        w_scale=s_w, w_offset=off_w - 128.0,     # codes are stored as q - 128
        block_budget=mm_budget, vmem_limit=vmem_limit)

    # 3) activation quantizer (minmax, asymmetric), in-place over the output.
    a_min = jnp.min(mins)
    a_max = jnp.max(maxs)
    s_a = jnp.maximum((a_max - a_min) / QMAX, EPS)
    off_a = jnp.round(-a_min / s_a)
    out = pallas_qdq(out, s_a, off_a, block_budget=ew_budget,
                     vmem_limit=vmem_limit)

    return out.reshape(batch_shape + (O,))


# --------------------------- reference (plain JAX) ---------------------------

def reference_forward(x, weight, bias, quantize=True):
    def qdq(v):
        vmin, vmax = jnp.min(v), jnp.max(v)
        scale = (vmax - vmin) / QMAX
        offset = jnp.round(-vmin / scale)
        q = jnp.clip(jnp.round(v / scale) + offset, 0.0, QMAX) - offset
        return q * scale

    w = qdq(weight) if quantize else weight
    out = jnp.matmul(x, w.T, precision=jax.lax.Precision.HIGHEST) + bias
    if quantize:
        out = qdq(out)
    return out


# ------------------------------- main ----------------------------------------

if __name__ == "__main__":
    key = jax.random.PRNGKey(0)
    k_x, k_w, k_b = jax.random.split(key, 3)

    B, S, K, O = 2, 8, 32, 64     # batch=2, seq=8, in_features=32, out_features=64
    x = jax.random.normal(k_x, (B, S, K), dtype=jnp.float32)
    weight = jax.random.normal(k_w, (O, K), dtype=jnp.float32) / jnp.sqrt(K)
    bias = jax.random.normal(k_b, (O,), dtype=jnp.float32) * 0.1

    out = quant_linear_forward(x, weight, bias, quantize=True)
    out = jax.block_until_ready(out)

    ref = reference_forward(x, weight, bias, quantize=True)
    err = float(jnp.max(jnp.abs(out - ref)))
    assert out.shape == (B, S, O), out.shape
    assert err < 0.1, f"max abs err too large: {err}"

    print("KERNEL_OK")
</pallas_src>

<mosaic_0001>
module attributes {stable_mosaic.version = 11 : i64} {
  func.func @_minmax_kernel(%arg0: i32, %arg1: memref<64x32xf32, #tpu.memory_space<vmem>>, %arg2: memref<8x128xf32, #tpu.memory_space<vmem>>, %arg3: memref<8x128xf32, #tpu.memory_space<vmem>>) attributes {dimension_semantics = [#tpu.dimension_semantics<parallel>], iteration_bounds = array<i64: 1>, scalar_prefetch = 0 : i64, scratch_operands = 0 : i64, tpu.core_type = #tpu.core_type<tc>, window_params = [{transform_indices = @transform_0, window_bounds = array<i64: 64, 32>}, {transform_indices = @transform_1, window_bounds = array<i64: 8, 128>}, {transform_indices = @transform_2, window_bounds = array<i64: 8, 128>}]} {
    %c0 = arith.constant 0 : index
    %c0_0 = arith.constant 0 : index
    %0 = vector.load %arg1[%c0, %c0_0] : memref<64x32xf32, #tpu.memory_space<vmem>>, vector<64x32xf32>
    %1 = vector.shape_cast %0 : vector<64x32xf32> to vector<1x64x32xf32>
    %cst = arith.constant dense<0x7F800000> : vector<1xf32>
    %2 = vector.multi_reduction <minimumf>, %1, %cst [1, 2] : vector<1x64x32xf32> to vector<1xf32>
    %3 = vector.shape_cast %2 : vector<1xf32> to vector<1x1x1xf32>
    %4 = vector.extract %3[0, 0, 0] : f32 from vector<1x1x1xf32>
    %5 = vector.shape_cast %0 : vector<64x32xf32> to vector<1x64x32xf32>
    %cst_1 = arith.constant dense<0xFF800000> : vector<1xf32>
    %6 = vector.multi_reduction <maximumf>, %5, %cst_1 [1, 2] : vector<1x64x32xf32> to vector<1xf32>
    %7 = vector.shape_cast %6 : vector<1xf32> to vector<1x1x1xf32>
    %8 = vector.extract %7[0, 0, 0] : f32 from vector<1x1x1xf32>
    %9 = vector.broadcast %4 : f32 to vector<8x128xf32>
    %c0_2 = arith.constant 0 : index
    %c0_3 = arith.constant 0 : index
    %10 = vector.load %arg2[%c0_2, %c0_3] : memref<8x128xf32, #tpu.memory_space<vmem>>, vector<8x128xf32>
    tpu.vector_store %arg2[%c0_2, %c0_3], %9 {strides = array<i32>} : memref<8x128xf32, #tpu.memory_space<vmem>>, vector<8x128xf32>,
    %11 = vector.broadcast %8 : f32 to vector<8x128xf32>
    %c0_4 = arith.constant 0 : index
    %c0_5 = arith.constant 0 : index
    %12 = vector.load %arg3[%c0_4, %c0_5] : memref<8x128xf32, #tpu.memory_space<vmem>>, vector<8x128xf32>
    tpu.vector_store %arg3[%c0_4, %c0_5], %11 {strides = array<i32>} : memref<8x128xf32, #tpu.memory_space<vmem>>, vector<8x128xf32>,
    return
  }
  func.func @transform_0(%arg0: i32) -> (i32, i32) {
    %c0_i32 = arith.constant 0 : i32
    %c0_i32_0 = arith.constant 0 : i32
    return %arg0, %c0_i32 : i32, i32
  }
  func.func @transform_1(%arg0: i32) -> (i32, i32) {
    %c0_i32 = arith.constant 0 : i32
    %c0_i32_0 = arith.constant 0 : i32
    return %arg0, %c0_i32 : i32, i32
  }
  func.func @transform_2(%arg0: i32) -> (i32, i32) {
    %c0_i32 = arith.constant 0 : i32
    %c0_i32_0 = arith.constant 0 : i32
    return %arg0, %c0_i32 : i32, i32
  }
}

</mosaic_0001>

<llo_original>
// kernel: tpu_custom_call.1
$region0: #{tpu_custom_call.1}
  #allocation0 [shape = 'u32[]', space=smem, size = 0x4, offset = 0x4, fixed_abs, tag = 'smem constant byte address 0x4 - core index']
  #allocation1 [shape = 'u32[144,128]{1,0:T(1,128)}', space=vmem, size = 0x12000, scoped, tag = 'internal scratch']
  %s0 = inlined_call_operand.vmem [shape: f32[64,32], index: 0, kind: input, shape index: {}]
  %s1 = inlined_call_operand.hbm [shape: f32[8,128], index: 1, kind: output, shape index: {0}]
  %s2 = inlined_call_operand.hbm [shape: f32[8,128], index: 2, kind: output, shape index: {1}]
  %3 = xla_tuple %s1, %s2
  %s4 = sld [smem:[#allocation0]]
  $region22: #{tpu_custom_call.1} parent=0
    _
  %s6 = ssub.s32 1, %s4
  %s7 = scalar_select 0, %s6, %s4
  $region1: #{tpu_custom_call.1} parent=0
    #allocation2 [shape = 'u8[4096]{0}', space=vmem, size = 0x1000, scoped, tag = 'output window, operand 0, single buffered']
    #allocation3 [shape = 's32[1]{0}', space=sflag, size = 0x4, scoped, tag = 'scoped memory for tpu_custom_call.1']
    #allocation4 [shape = 'u8[4096]{0}', space=vmem, size = 0x1000, scoped, tag = 'output window, operand 1, single buffered']
    #allocation5 [shape = 's32[1]{0}', space=sflag, size = 0x4, scoped, tag = 'scoped memory for tpu_custom_call.1']
    %8 = vsyncpa [#allocation3], 0
    %9 = vsyncpa [#allocation5], 0
    // Predicated region
    $region2: #{tpu_custom_call.1} parent=1 // pred_check
      _
    $region3: #{tpu_custom_call.1} parent=1 // pred_check_branch
      %11 = sbr.rel (0) target = $region5
    $region4: #{tpu_custom_call.1} parent=1 // pred_region
      _
    $region5: #{tpu_custom_call.1} parent=1 // pred_fallthru
      _
    %v12 = vld [vmem:[%s0] sm:$0xff]
    %v13 = vld [vmem:[%s0 + $0x8] sm:$0xff]
    %v14 = vld [vmem:[%s0 + $0x10] sm:$0xff]
    %v15 = vld [vmem:[%s0 + $0x18] sm:$0xff]
    %v16 = vld [vmem:[%s0 + $0x20] sm:$0xff]
    %v17 = vld [vmem:[%s0 + $0x28] sm:$0xff]
    %v18 = vld [vmem:[%s0 + $0x30] sm:$0xff]
    %v19 = vld [vmem:[%s0 + $0x38] sm:$0xff]
    %vm20 = vcmask 261120
    %v21 = vsel %vm20, %v12, inf
    %v22 = vsel %vm20, %v13, inf
    %v23 = vsel %vm20, %v14, inf
    %v24 = vsel %vm20, %v15, inf
    %v25 = vsel %vm20, %v16, inf
    %v26 = vmin.f32 %v21, %v25
    %v27 = vsel %vm20, %v17, inf
    %v28 = vmin.f32 %v22, %v27
    %v29 = vsel %vm20, %v18, inf
    %v30 = vmin.f32 %v23, %v29
    %v31 = vsel %vm20, %v19, inf
    %v32 = vmin.f32 %v24, %v31
    %v33 = vmin.f32 %v26, %v28
    %v34 = vmin.f32 %v30, %v32
    %v35 = vmin.f32 %v33, %v34
    %36 = vmin.xlane.f32.xlu0 %v35
    %v37 = vpop.xlane.xlu0 %36
    %v38 = vrot.slane %v37, 4
    %v39 = vmin.f32 %v37, %v38
    %v40 = vrot.slane %v39, 2
    %v41 = vmin.f32 %v39, %v40
    %v42 = vrot.slane %v41, 1
    %v43 = vmin.f32 %v41, %v42
    %s44 = vtos %v43
    %v45 = vsel %vm20, %v12, -inf
    %v46 = vsel %vm20, %v13, -inf
    %v47 = vsel %vm20, %v14, -inf
    %v48 = vsel %vm20, %v15, -inf
    %v49 = vsel %vm20, %v16, -inf
    %v50 = vmax.f32 %v45, %v49
    %v51 = vsel %vm20, %v17, -inf
    %v52 = vmax.f32 %v46, %v51
    %v53 = vsel %vm20, %v18, -inf
    %v54 = vmax.f32 %v47, %v53
    %v55 = vsel %vm20, %v19, -inf
    %v56 = vmax.f32 %v48, %v55
    %v57 = vmax.f32 %v50, %v52
    %v58 = vmax.f32 %v54, %v56
    %v59 = vmax.f32 %v57, %v58
    %60 = vmax.xlane.f32.xlu0 %v59
    %v61 = vpop.xlane.xlu0 %60
    %v62 = vrot.slane %v61, 4
    %v63 = vmax.f32 %v61, %v62
    %v64 = vrot.slane %v63, 2
    %v65 = vmax.f32 %v63, %v64
    %v66 = vrot.slane %v65, 1
    %v67 = vmax.f32 %v65, %v66
    %s68 = vtos %v67
    %v69 = vstv %s44
    %70 = vst [vmem:[#allocation2] sm:$0xff] %v69
    %v71 = vstv %s68
    %72 = vst [vmem:[#allocation4] sm:$0xff] %v71
    // Predicated region
    $region6: #{tpu_custom_call.1} parent=1 // pred_check
      _
    $region7: #{tpu_custom_call.1} parent=1 // pred_check_branch
      %74 = sbr.rel (0) target = $region9
    $region8: #{tpu_custom_call.1} parent=1 // pred_region
      %s76 = ssub.s32 128, 128
      %77 = vsyncadd [#allocation3], %s76
      %s79 = sshll.u32 [#allocation2], 4
      %s80 = int_to_ptr.vmem [resolvable:$true] %s79
      %82 = dma.vmem_to_hbm [thread:$0]  %s80, 128, %s1, [#allocation3]
    $region9: #{tpu_custom_call.1} parent=1 // pred_fallthru
      _
    // Predicated region
    $region10: #{tpu_custom_call.1} parent=1 // pred_check
      _
    $region11: #{tpu_custom_call.1} parent=1 // pred_check_branch
      %84 = sbr.rel (0) target = $region13
    $region12: #{tpu_custom_call.1} parent=1 // pred_region
      %s86 = ssub.s32 128, 128
      %87 = vsyncadd [#allocation5], %s86
      %s89 = sshll.u32 [#allocation4], 4
      %s90 = int_to_ptr.vmem [resolvable:$true] %s89
      %92 = dma.vmem_to_hbm [thread:$0]  %s90, 128, %s2, [#allocation5]
    $region13: #{tpu_custom_call.1} parent=1 // pred_fallthru
      _
    // Predicated region
    $region14: #{tpu_custom_call.1} parent=1 // pred_check
      _
    $region15: #{tpu_custom_call.1} parent=1 // pred_check_branch
      %94 = sbr.rel (0) target = $region17
    $region16: #{tpu_custom_call.1} parent=1 // pred_region
      %95 = dma.done [#allocation3], 128
    $region17: #{tpu_custom_call.1} parent=1 // pred_fallthru
      _
    // Predicated region
    $region18: #{tpu_custom_call.1} parent=1 // pred_check
      _
    $region19: #{tpu_custom_call.1} parent=1 // pred_check_branch
      %97 = sbr.rel (0) target = $region21
    $region20: #{tpu_custom_call.1} parent=1 // pred_region
      %98 = dma.done [#allocation5], 128
    $region21: #{tpu_custom_call.1} parent=1 // pred_fallthru
      _
    %99 = vsyncpa [#allocation3], 1
    %100 = vsyncpa [#allocation5], 1

</llo_original>
